<compile_context>
chip_gen: v6e
topology: v6e:2x2x1
jax: 0.10.0
libtpu: 0.0.40
codegen_flags: <defaults>
</compile_context>

<pallas_src>
import functools

import jax
import jax.numpy as jnp
from jax import lax
from jax.experimental import pallas as pl
from jax.experimental.pallas import tpu as pltpu

LANE = 128
TARGET_BLOCK_BYTES = 4 * 1024 * 1024   # aim for >= ~4 MiB x-tiles (roofline regime)


def _round_up(n, m):
    return ((n + m - 1) // m) * m


def _vmem_capacity_bytes():
    try:
        info = pltpu.get_tpu_info()
        cap = getattr(info, "vmem_capacity_bytes", None)
        if cap:
            return int(cap)
    except Exception:
        pass
    return 64 * 1024 * 1024   # conservative default: assume v7x-class (64 MiB / TC)


def _budgets():
    """Generation-specific (block_budget_bytes, vmem_limit_bytes, min_grid_steps)."""
    cap = _vmem_capacity_bytes()
    if cap >= 100 * 1024 * 1024:
        # v5e / v6e: 128 MiB physical VMEM -> keep the fused single-pass path
        # alive for large C*HW slabs (avoids the fallback's extra pass over x).
        return 96 * 2**20, 110 * 2**20, 2
    # v7x: 64 MiB per TensorCore, 2 TCs sharing the chip -> tighter per-step
    # blocks, longer grid so both cores get work and pipelining stays deep.
    return 22 * 2**20, 48 * 2**20, 4


# --------------------- fused kernel: pool + gate + multiply -------------------
def fused_ring_kernel(x_ref, rw_ref, w1t_ref, w2_ref, o_ref, *, hw, inv_hw):
    # x_ref  : (Bb, C, HW)   rw_ref: (Bb, 1, HW)  (precomputed Gaussian weight)
    # w1t_ref: (C, HID) = fc1.weight^T            w2_ref: (C, HID) = fc2.weight
    x = x_ref[...]

    # --- squeeze: mean over true spatial size.  The last dim may not be a
    # multiple of 128; lane padding of the VMEM tile is unspecified, so zero it
    # before the lane reduce (one vselect per vreg, VALU has slack). ---
    lane_idx = lax.broadcasted_iota(jnp.int32, x.shape, dimension=2)
    pooled = jnp.sum(jnp.where(lane_idx < hw, x, 0.0),
                     axis=-1, keepdims=True) * inv_hw              # (Bb, C, 1)

    # --- excitation MLP on VPU/XLU (broadcast-mul + keepdims reduce, no MXU) ---
    h = jnp.sum(pooled * w1t_ref[...], axis=1, keepdims=True)      # (Bb, 1, HID)
    h = jnp.maximum(h, 0.0)
    z = jnp.sum(h * w2_ref[...], axis=-1, keepdims=True)           # (Bb, C, 1)
    y = jax.nn.sigmoid(z)                                          # (Bb, C, 1)

    # --- elementwise hot path ---
    o_ref[...] = x * y * rw_ref[...]


# ------------- two-pass fallback: pure elementwise gated multiply -------------
def gated_mul_kernel(x_ref, rw_ref, y_ref, o_ref):
    # x_ref: (C, HWT)   rw_ref: (1, HWT)   y_ref: (C, 1)
    o_ref[...] = x_ref[...] * y_ref[...] * rw_ref[...]


# ------------------------------- JAX glue -------------------------------------
def bilinear_resize_nchw(x, out_h, out_w):
    """F.interpolate(mode='bilinear', align_corners=False) equivalent."""
    b, c, in_h, in_w = x.shape

    def coords(out_size, in_size):
        i = jnp.arange(out_size, dtype=jnp.float32)
        src = (i + 0.5) * (in_size / out_size) - 0.5
        src = jnp.clip(src, 0.0, float(in_size - 1))
        i0 = jnp.floor(src).astype(jnp.int32)
        i1 = jnp.minimum(i0 + 1, in_size - 1)
        frac = src - i0.astype(jnp.float32)
        return i0, i1, frac

    y0, y1, fy = coords(out_h, in_h)
    x0, x1, fx = coords(out_w, in_w)

    top = x[:, :, y0, :]
    bot = x[:, :, y1, :]
    rows = top * (1.0 - fy)[None, None, :, None] + bot * fy[None, None, :, None]
    left = rows[:, :, :, x0]
    right = rows[:, :, :, x1]
    return left * (1.0 - fx) + right * fx


def ring_attention(x, radial_map, w1, w2, *, center=0.6, sigma=0.06,
                   force_two_pass=False):
    """x: (B,C,H,W) f32, radial_map: (B,1,h,w) f32.
    w1: (HID, C) -- fc1.weight (PyTorch layout), w2: (C, HID) -- fc2.weight."""
    b, c, fh, fw = x.shape
    hid = w1.shape[0]
    hw = fh * fw
    inv_two_sigma_sq = 1.0 / (2.0 * sigma * sigma)
    block_budget, vmem_limit, min_steps = _budgets()

    # Glue: resize radial map + precompute Gaussian ring weight (B*HW, tiny).
    rm = bilinear_resize_nchw(radial_map, fh, fw).reshape(b, 1, hw)
    rw = jnp.exp(-jnp.square(rm - center) * inv_two_sigma_sq)      # (B, 1, HW)
    x_flat = x.reshape(b, c, hw)      # no jnp.pad: full-dim blocks are legal

    # Physical VMEM footprint estimates (sublane pad to 8, lane pad to 128).
    c_pad = _round_up(c, 8)
    hw_pad = _round_up(hw, LANE)
    hid_pad = _round_up(hid, LANE)
    per_batch_tile = c_pad * hw_pad * 4

    def fused_step_bytes(bb):
        # double-buffered x-in + out, double-buffered rw, weights (x2 safety).
        return (4 * bb * per_batch_tile
                + 2 * bb * 8 * hw_pad * 4
                + 4 * c_pad * hid_pad * 4)

    use_fused = (not force_two_pass) and fused_step_bytes(1) <= block_budget

    if use_fused:
        # bb: big enough to amortize per-step overhead (>= ~4 MiB x-tile), but
        # keep >= min_steps grid steps (pipelining + megacore) and fit VMEM.
        bb_cap_grid = max(1, b // min_steps)
        bb_cap_vmem = 1
        while bb_cap_vmem < b and fused_step_bytes(bb_cap_vmem + 1) <= block_budget:
            bb_cap_vmem += 1
        bb_target = max(1, -(-TARGET_BLOCK_BYTES // per_batch_tile))
        bb = max(1, min(bb_cap_grid, bb_cap_vmem, bb_target))
        grid = (pl.cdiv(b, bb),)     # ragged trailing block OK: rows independent

        kernel = functools.partial(fused_ring_kernel, hw=hw, inv_hw=1.0 / hw)
        cost = pl.CostEstimate(
            flops=4 * b * c * hw,
            transcendentals=b * c,
            bytes_accessed=(2 * b * c * hw + b * hw + 2 * c * hid) * 4)

        out = pl.pallas_call(
            kernel,
            out_shape=jax.ShapeDtypeStruct((b, c, hw), jnp.float32),
            grid_spec=pltpu.PrefetchScalarGridSpec(
                num_scalar_prefetch=0,
                grid=grid,
                in_specs=[
                    pl.BlockSpec((bb, c, hw), lambda i: (i, 0, 0)),   # x
                    pl.BlockSpec((bb, 1, hw), lambda i: (i, 0, 0)),   # ring weight
                    pl.BlockSpec((c, hid), lambda i: (0, 0)),         # fc1.weight^T
                    pl.BlockSpec((c, hid), lambda i: (0, 0)),         # fc2.weight
                ],
                out_specs=pl.BlockSpec((bb, c, hw), lambda i: (i, 0, 0)),
            ),
            compiler_params=pltpu.CompilerParams(
                dimension_semantics=("parallel",),
                vmem_limit_bytes=vmem_limit),
            cost_estimate=cost,
        )(x_flat, rw, jnp.transpose(w1), w2)
    else:
        # Two-pass fallback (slab exceeds the VMEM budget): gate from a
        # contiguous last-axis reduce over x_flat (pure HBM-roofline cost),
        # then a lane-dense elementwise Pallas kernel over (batch, HW tiles).
        pooled = jnp.sum(x_flat, axis=-1) * (1.0 / hw)              # (B, C)
        h = jnp.maximum(pooled @ w1.T, 0.0)                         # (B, HID)
        y = jax.nn.sigmoid(h @ w2.T)[:, :, None]                    # (B, C, 1)

        per_col_bytes = (4 * c_pad + 2 * 8) * 4    # dbl-buf x in+out + dbl-buf rw
        max_hwt = max(LANE, (block_budget // per_col_bytes) // LANE * LANE)
        tgt_hwt = max(LANE, (TARGET_BLOCK_BYTES // (c_pad * 4)) // LANE * LANE)
        hwt = min(max_hwt, tgt_hwt)
        if hwt >= hw:
            hwt = hw                               # full last dim is always legal
        grid = (b, pl.cdiv(hw, hwt))               # ragged trailing HW tile OK

        cost = pl.CostEstimate(
            flops=2 * b * c * hw,
            transcendentals=0,
            bytes_accessed=(2 * b * c * hw + b * hw + b * c) * 4)

        out = pl.pallas_call(
            gated_mul_kernel,
            out_shape=jax.ShapeDtypeStruct((b, c, hw), jnp.float32),
            grid_spec=pltpu.PrefetchScalarGridSpec(
                num_scalar_prefetch=0,
                grid=grid,
                in_specs=[
                    pl.BlockSpec((None, c, hwt), lambda i, t: (i, 0, t)),   # x tile
                    pl.BlockSpec((None, 1, hwt), lambda i, t: (i, 0, t)),   # rw tile
                    pl.BlockSpec((None, c, 1), lambda i, t: (i, 0, 0)),     # gate y
                ],
                out_specs=pl.BlockSpec((None, c, hwt), lambda i, t: (i, 0, t)),
            ),
            compiler_params=pltpu.CompilerParams(
                dimension_semantics=("parallel", "parallel"),
                vmem_limit_bytes=vmem_limit),
            cost_estimate=cost,
        )(x_flat, rw, y)

    return out.reshape(b, c, fh, fw)


# Pure-JAX reference for a sanity check.
def ring_attention_ref(x, radial_map, w1, w2, *, center=0.6, sigma=0.06):
    b, c, fh, fw = x.shape
    pooled = jnp.mean(x, axis=(2, 3))                       # (B, C)
    h = jnp.maximum(pooled @ w1.T, 0.0)                     # (B, HID)
    y = jax.nn.sigmoid(h @ w2.T)[:, :, None, None]          # (B, C, 1, 1)
    rm = bilinear_resize_nchw(radial_map, fh, fw)           # (B, 1, fh, fw)
    rw = jnp.exp(-(rm - center) ** 2 / (2.0 * sigma ** 2))
    return x * y * rw


if __name__ == "__main__":
    key = jax.random.PRNGKey(0)
    k1, k2, k3, k4 = jax.random.split(key, 4)

    B, C, FH, FW = 2, 32, 16, 16          # x shape
    RED = 16                              # reduction -> hidden = 2
    HID = C // RED
    RH, RW_ = 8, 8                        # radial_map spatial size (upsampled)

    x = jax.random.normal(k1, (B, C, FH, FW), dtype=jnp.float32)
    radial_map = jax.random.uniform(k2, (B, 1, RH, RW_), dtype=jnp.float32)

    # Deterministic parameter init (nn.Linear weights, bias=False as in the module).
    w1 = jax.random.normal(k3, (HID, C), dtype=jnp.float32) * (1.0 / jnp.sqrt(C))
    w2 = jax.random.normal(k4, (C, HID), dtype=jnp.float32) * (1.0 / jnp.sqrt(HID))

    ref = ring_attention_ref(x, radial_map, w1, w2, center=0.6, sigma=0.06)

    # Fused single-pass path (default for shapes that fit the VMEM budget).
    out = ring_attention(x, radial_map, w1, w2, center=0.6, sigma=0.06)
    out = jax.block_until_ready(out)
    assert out.shape == (B, C, FH, FW)
    assert jnp.allclose(out, ref, atol=1e-5, rtol=1e-5), "fused path mismatch"

    # Two-pass elementwise path (auto-selected for huge C*H*W; exercised here).
    out2 = ring_attention(x, radial_map, w1, w2, center=0.6, sigma=0.06,
                          force_two_pass=True)
    out2 = jax.block_until_ready(out2)
    assert jnp.allclose(out2, ref, atol=1e-5, rtol=1e-5), "two-pass path mismatch"

    print("KERNEL_OK")
</pallas_src>

<mosaic_0001>
module attributes {stable_mosaic.version = 11 : i64} {
  func.func @fused_ring_kernel(%arg0: i32, %arg1: memref<1x32x256xf32, #tpu.memory_space<vmem>>, %arg2: memref<1x1x256xf32, #tpu.memory_space<vmem>>, %arg3: memref<32x2xf32, #tpu.memory_space<vmem>>, %arg4: memref<32x2xf32, #tpu.memory_space<vmem>>, %arg5: memref<1x32x256xf32, #tpu.memory_space<vmem>>) attributes {dimension_semantics = [#tpu.dimension_semantics<parallel>], iteration_bounds = array<i64: 2>, scalar_prefetch = 0 : i64, scratch_operands = 0 : i64, tpu.core_type = #tpu.core_type<tc>, window_params = [{transform_indices = @transform_0, window_bounds = array<i64: 1, 32, 256>}, {transform_indices = @transform_1, window_bounds = array<i64: 1, 1, 256>}, {pipeline_mode = #tpu.pipeline_mode<synchronous>, transform_indices = @transform_2, window_bounds = array<i64: 32, 2>}, {pipeline_mode = #tpu.pipeline_mode<synchronous>, transform_indices = @transform_3, window_bounds = array<i64: 32, 2>}, {transform_indices = @transform_4, window_bounds = array<i64: 1, 32, 256>}]} {
    %c0 = arith.constant 0 : index
    %c0_0 = arith.constant 0 : index
    %c0_1 = arith.constant 0 : index
    %0 = vector.load %arg1[%c0, %c0_0, %c0_1] : memref<1x32x256xf32, #tpu.memory_space<vmem>>, vector<1x32x256xf32>
    %1 = tpu.iota {dimensions = array<i32: 2>} : vector<1x32x256xi32>
    %c256_i32 = arith.constant 256 : i32
    %2 = vector.broadcast %c256_i32 : i32 to vector<1x32x256xi32>
    %3 = arith.cmpi slt, %1, %2 : vector<1x32x256xi32>
    %cst = arith.constant 0.000000e+00 : f32
    %4 = vector.broadcast %cst : f32 to vector<1x32x256xf32>
    %5 = arith.select %3, %0, %4 : vector<1x32x256xi1>, vector<1x32x256xf32>
    %cst_2 = arith.constant dense<0.000000e+00> : vector<1x32xf32>
    %6 = vector.multi_reduction <add>, %5, %cst_2 [2] : vector<1x32x256xf32> to vector<1x32xf32>
    %7 = vector.shape_cast %6 : vector<1x32xf32> to vector<1x32x1xf32>
    %cst_3 = arith.constant 3.906250e-03 : f32
    %8 = vector.broadcast %cst_3 : f32 to vector<1x32x1xf32>
    %9 = arith.mulf %7, %8 : vector<1x32x1xf32>
    %c0_4 = arith.constant 0 : index
    %c0_5 = arith.constant 0 : index
    %10 = vector.load %arg3[%c0_4, %c0_5] : memref<32x2xf32, #tpu.memory_space<vmem>>, vector<32x2xf32>
    %11 = vector.shape_cast %10 : vector<32x2xf32> to vector<1x32x2xf32>
    %12 = vector.broadcast %9 : vector<1x32x1xf32> to vector<1x32x2xf32>
    %13 = arith.mulf %12, %11 : vector<1x32x2xf32>
    %cst_6 = arith.constant dense<0.000000e+00> : vector<1x2xf32>
    %14 = vector.multi_reduction <add>, %13, %cst_6 [1] : vector<1x32x2xf32> to vector<1x2xf32>
    %15 = vector.shape_cast %14 : vector<1x2xf32> to vector<1x1x2xf32>
    %cst_7 = arith.constant 0.000000e+00 : f32
    %16 = vector.broadcast %cst_7 : f32 to vector<1x1x2xf32>
    %17 = arith.maximumf %15, %16 : vector<1x1x2xf32>
    %c0_8 = arith.constant 0 : index
    %c0_9 = arith.constant 0 : index
    %18 = vector.load %arg4[%c0_8, %c0_9] : memref<32x2xf32, #tpu.memory_space<vmem>>, vector<32x2xf32>
    %19 = vector.shape_cast %18 : vector<32x2xf32> to vector<1x32x2xf32>
    %20 = vector.broadcast %17 : vector<1x1x2xf32> to vector<1x32x2xf32>
    %21 = arith.mulf %20, %19 : vector<1x32x2xf32>
    %cst_10 = arith.constant dense<0.000000e+00> : vector<1x32xf32>
    %22 = vector.multi_reduction <add>, %21, %cst_10 [2] : vector<1x32x2xf32> to vector<1x32xf32>
    %23 = vector.shape_cast %22 : vector<1x32xf32> to vector<1x32x1xf32>
    %24 = arith.negf %23 : vector<1x32x1xf32>
    %25 = math.exp %24 : vector<1x32x1xf32>
    %cst_11 = arith.constant 1.000000e+00 : f32
    %26 = vector.broadcast %cst_11 : f32 to vector<1x32x1xf32>
    %27 = arith.addf %26, %25 : vector<1x32x1xf32>
    %28 = arith.divf %26, %27 : vector<1x32x1xf32>
    %29 = vector.broadcast %28 : vector<1x32x1xf32> to vector<1x32x256xf32>
    %30 = arith.mulf %0, %29 : vector<1x32x256xf32>
    %c0_12 = arith.constant 0 : index
    %c0_13 = arith.constant 0 : index
    %c0_14 = arith.constant 0 : index
    %31 = vector.load %arg2[%c0_12, %c0_13, %c0_14] : memref<1x1x256xf32, #tpu.memory_space<vmem>>, vector<1x1x256xf32>
    %32 = vector.broadcast %31 : vector<1x1x256xf32> to vector<1x32x256xf32>
    %33 = arith.mulf %30, %32 : vector<1x32x256xf32>
    %c0_15 = arith.constant 0 : index
    %c0_16 = arith.constant 0 : index
    %c0_17 = arith.constant 0 : index
    %34 = vector.load %arg5[%c0_15, %c0_16, %c0_17] : memref<1x32x256xf32, #tpu.memory_space<vmem>>, vector<1x32x256xf32>
    tpu.vector_store %arg5[%c0_15, %c0_16, %c0_17], %33 {strides = array<i32>} : memref<1x32x256xf32, #tpu.memory_space<vmem>>, vector<1x32x256xf32>,
    return
  }
  func.func @transform_0(%arg0: i32) -> (i32, i32, i32) {
    %c0_i32 = arith.constant 0 : i32
    %c0_i32_0 = arith.constant 0 : i32
    %c0_i32_1 = arith.constant 0 : i32
    return %arg0, %c0_i32, %c0_i32_0 : i32, i32, i32
  }
  func.func @transform_1(%arg0: i32) -> (i32, i32, i32) {
    %c0_i32 = arith.constant 0 : i32
    %c0_i32_0 = arith.constant 0 : i32
    %c0_i32_1 = arith.constant 0 : i32
    return %arg0, %c0_i32, %c0_i32_0 : i32, i32, i32
  }
  func.func @transform_2(%arg0: i32) -> (i32, i32) {
    %c0_i32 = arith.constant 0 : i32
    %c0_i32_0 = arith.constant 0 : i32
    %c0_i32_1 = arith.constant 0 : i32
    return %c0_i32, %c0_i32_0 : i32, i32
  }
  func.func @transform_3(%arg0: i32) -> (i32, i32) {
    %c0_i32 = arith.constant 0 : i32
    %c0_i32_0 = arith.constant 0 : i32
    %c0_i32_1 = arith.constant 0 : i32
    return %c0_i32, %c0_i32_0 : i32, i32
  }
  func.func @transform_4(%arg0: i32) -> (i32, i32, i32) {
    %c0_i32 = arith.constant 0 : i32
    %c0_i32_0 = arith.constant 0 : i32
    %c0_i32_1 = arith.constant 0 : i32
    return %arg0, %c0_i32, %c0_i32_0 : i32, i32, i32
  }
}

</mosaic_0001>

<llo_original>
// kernel: tpu_custom_call.1
$region0: #{tpu_custom_call.1}
  #allocation0 [shape = 'u32[]', space=smem, size = 0x4, offset = 0x4, fixed_abs, tag = 'smem constant byte address 0x4 - core index']
  #allocation1 [shape = 'u32[144,128]{1,0:T(1,128)}', space=vmem, size = 0x12000, scoped, tag = 'internal scratch']
  %s0 = inlined_call_operand.hbm [shape: f32[2,32,256], index: 0, kind: input, shape index: {}]
  %s1 = inlined_call_operand.vmem [shape: f32[2,1,256], index: 1, kind: input, shape index: {}]
  %s2 = inlined_call_operand.vmem [shape: f32[32,2], index: 2, kind: input, shape index: {}]
  %s3 = inlined_call_operand.vmem [shape: f32[32,2], index: 3, kind: input, shape index: {}]
  %s4 = inlined_call_operand.hbm [shape: f32[2,32,256], index: 4, kind: output, shape index: {}]
  %s5 = sld [smem:[#allocation0]]
  $region53: #{tpu_custom_call.1} parent=0
    _
  %s7 = ssub.s32 1, %s5
  %s8 = scalar_select 0, %s7, %s5
  $region1: #{tpu_custom_call.1} parent=0
    #allocation2 [shape = 'u8[65536]{0}', space=vmem, size = 0x10000, scoped, tag = 'input window, operand 0']
    #allocation3 [shape = 's32[2]{0}', space=sflag, size = 0x8, scoped, tag = 'scoped memory for tpu_custom_call.1']
    #allocation4 [shape = 's32[2]{0}', space=sflag, size = 0x8, scoped, tag = 'scoped memory for tpu_custom_call.1']
    #allocation5 [shape = 'u8[65536]{0}', space=vmem, size = 0x10000, scoped, tag = 'output window, operand 0']
    %9 = vsyncpa [#allocation3], 0
    %s10 = scalar_lea.sflag [#allocation3], 1
    %11 = vsyncpa %s10, 0
    %12 = vsyncpa [#allocation4], 0
    %s13 = scalar_lea.sflag [#allocation4], 1
    %14 = vsyncpa %s13, 0
    loop: start=0, step=1, limit=4
    $region2: #{tpu_custom_call.1} parent=1 // loop_pre_header
      _
    $region3: #{tpu_custom_call.1} parent=1 // loop_header
      %s16 = sphi 0, %s20
      %p17 = scmp.ge.s32.totalorder %s16, 4
      %s26 = sphi 0, %s28
      %s29 = sphi 0, %s26
      %s30 = sphi 0, %s29
      %s46 = sphi 0, %s30
      %s52 = sphi 0, %s54
      %s55 = sphi 0, %s52
      %s56 = sphi 0, %s55
      %s72 = sphi 0, %s56
      %s76 = sphi 0, %s76
      %s78 = sphi 0, %s76
      %s79 = sphi 0, %s78
      %s93 = sphi 0, %s79
      %s97 = sphi 0, %s97
      %s99 = sphi 0, %s97
      %s100 = sphi 0, %s99
      %s114 = sphi 0, %s100
      %s120 = sphi 0, %s122
      %s123 = sphi 0, %s120
      %s124 = sphi 0, %s123
      %s140 = sphi 0, %s124
    $region4: #{tpu_custom_call.1} parent=1 // loop_header_branch
      %19 = sbr.rel (%p17) target = $region8
    $region5: #{tpu_custom_call.1} parent=1 // loop_body
      %s21 = ssub.s32 %s16, 1
      %s22 = ssub.s32 %s16, 2
      %s23 = sadd.s32 %s16, 1
      %s24 = ssub.s32 %s16, %s23
      %p25 = scmp.eq.s32.totalorder %s24, 0
      %s27 = sadd.s32 %s26, 1
      %s28 = scalar_select %p25, %s26, %s27
      %p31 = pneg %p25
      %p32 = scmp.eq.s32.totalorder %s16, 1
      %p33 = por %p31, %p32
      %p34 = scmp.ne.s32.totalorder %s26, %s29
      %p35 = scmp.eq.s32.totalorder %s16, 0
      %p36 = por %p34, %p35
      %p37 = scmp.ne.s32.totalorder %s26, %s29
      %p38 = scmp.eq.s32.totalorder %s21, 1
      %p39 = por %p37, %p38
      %p40 = scmp.ne.s32.totalorder %s29, %s30
      %p41 = scmp.eq.s32.totalorder %s21, 0
      %p42 = por %p40, %p41
      %p43 = scmp.ne.s32.totalorder %s29, %s30
      %p44 = scmp.eq.s32.totalorder %s22, 1
      %p45 = por %p43, %p44
      %p47 = scmp.ne.s32.totalorder %s30, %s46
      %p48 = scmp.eq.s32.totalorder %s22, 0
      %p49 = por %p47, %p48
      %s50 = ssub.s32 %s16, %s23
      %p51 = scmp.eq.s32.totalorder %s50, 0
      %s53 = sadd.s32 %s52, 1
      %s54 = scalar_select %p51, %s52, %s53
      %p57 = pneg %p51
      %p58 = scmp.eq.s32.totalorder %s16, 1
      %p59 = por %p57, %p58
      %p60 = scmp.ne.s32.totalorder %s52, %s55
      %p61 = scmp.eq.s32.totalorder %s16, 0
      %p62 = por %p60, %p61
      %p63 = scmp.ne.s32.totalorder %s52, %s55
      %p64 = scmp.eq.s32.totalorder %s21, 1
      %p65 = por %p63, %p64
      %p66 = scmp.ne.s32.totalorder %s55, %s56
      %p67 = scmp.eq.s32.totalorder %s21, 0
      %p68 = por %p66, %p67
      %p69 = scmp.ne.s32.totalorder %s55, %s56
      %p70 = scmp.eq.s32.totalorder %s22, 1
      %p71 = por %p69, %p70
      %p73 = scmp.ne.s32.totalorder %s56, %s72
      %p74 = scmp.eq.s32.totalorder %s22, 0
      %p75 = por %p73, %p74
      %s77 = sadd.s32 %s76, 1
      %p80 = scmp.eq.s32.totalorder %s16, 1
      %p81 = scmp.ne.s32.totalorder %s76, %s78
      %p82 = scmp.eq.s32.totalorder %s16, 0
      %p83 = por %p81, %p82
      %p84 = scmp.ne.s32.totalorder %s76, %s78
      %p85 = scmp.eq.s32.totalorder %s21, 1
      %p86 = por %p84, %p85
      %p87 = scmp.ne.s32.totalorder %s78, %s79
      %p88 = scmp.eq.s32.totalorder %s21, 0
      %p89 = por %p87, %p88
      %p90 = scmp.ne.s32.totalorder %s78, %s79
      %p91 = scmp.eq.s32.totalorder %s22, 1
      %p92 = por %p90, %p91
      %p94 = scmp.ne.s32.totalorder %s79, %s93
      %p95 = scmp.eq.s32.totalorder %s22, 0
      %p96 = por %p94, %p95
      %s98 = sadd.s32 %s97, 1
      %p101 = scmp.eq.s32.totalorder %s16, 1
      %p102 = scmp.ne.s32.totalorder %s97, %s99
      %p103 = scmp.eq.s32.totalorder %s16, 0
      %p104 = por %p102, %p103
      %p105 = scmp.ne.s32.totalorder %s97, %s99
      %p106 = scmp.eq.s32.totalorder %s21, 1
      %p107 = por %p105, %p106
      %p108 = scmp.ne.s32.totalorder %s99, %s100
      %p109 = scmp.eq.s32.totalorder %s21, 0
      %p110 = por %p108, %p109
      %p111 = scmp.ne.s32.totalorder %s99, %s100
      %p112 = scmp.eq.s32.totalorder %s22, 1
      %p113 = por %p111, %p112
      %p115 = scmp.ne.s32.totalorder %s100, %s114
      %p116 = scmp.eq.s32.totalorder %s22, 0
      %p117 = por %p115, %p116
      %s118 = ssub.s32 %s16, %s23
      %p119 = scmp.eq.s32.totalorder %s118, 0
      %s121 = sadd.s32 %s120, 1
      %s122 = scalar_select %p119, %s120, %s121
      %p125 = pneg %p119
      %p126 = scmp.eq.s32.totalorder %s16, 1
      %p127 = por %p125, %p126
      %p128 = scmp.ne.s32.totalorder %s120, %s123
      %p129 = scmp.eq.s32.totalorder %s16, 0
      %p130 = por %p128, %p129
      %p131 = scmp.ne.s32.totalorder %s120, %s123
      %p132 = scmp.eq.s32.totalorder %s21, 1
      %p133 = por %p131, %p132
      %p134 = scmp.ne.s32.totalorder %s123, %s124
      %p135 = scmp.eq.s32.totalorder %s21, 0
      %p136 = por %p134, %p135
      %p137 = scmp.ne.s32.totalorder %s123, %s124
      %p138 = scmp.eq.s32.totalorder %s22, 1
      %p139 = por %p137, %p138
      %p141 = scmp.ne.s32.totalorder %s124, %s140
      %p142 = scmp.eq.s32.totalorder %s22, 0
      %p143 = por %p141, %p142
      %p144 = scmp.le.s32.totalorder 1, %s16
      %p145 = scmp.lt.s32.totalorder %s16, 3
      %p146 = pnand %p144, %p145
      %p147 = pneg %p146
      // Predicated region
      $region9: #{tpu_custom_call.1} parent=5 // pred_check
        _
      $region10: #{tpu_custom_call.1} parent=5 // pred_check_branch
        %149 = sbr.rel (%p146) target = $region12
      $region11: #{tpu_custom_call.1} parent=5 // pred_region
        %s150 = ssub.s32 %s16, 1
        // Predicated region
        $region13: #{tpu_custom_call.1} parent=11 // pred_check
          %p151 = pneg %p89
        $region14: #{tpu_custom_call.1} parent=11 // pred_check_branch
          %153 = sbr.rel (%p151) target = $region16
        $region15: #{tpu_custom_call.1} parent=11 // pred_region
          _
        $region16: #{tpu_custom_call.1} parent=11 // pred_fallthru
          _
        // Predicated region
        $region17: #{tpu_custom_call.1} parent=11 // pred_check
          %p154 = pneg %p110
        $region18: #{tpu_custom_call.1} parent=11 // pred_check_branch
          %156 = sbr.rel (%p154) target = $region20
        $region19: #{tpu_custom_call.1} parent=11 // pred_region
          _
        $region20: #{tpu_custom_call.1} parent=11 // pred_fallthru
          _
      $region12: #{tpu_custom_call.1} parent=5 // pred_fallthru
        _
      %p157 = scmp.lt.s32.totalorder %s16, 2
      // Predicated region
      $region21: #{tpu_custom_call.1} parent=5 // pred_check
        %p158 = pneg %p157
      $region22: #{tpu_custom_call.1} parent=5 // pred_check_branch
        %160 = sbr.rel (%p158) target = $region24
      $region23: #{tpu_custom_call.1} parent=5 // pred_region
        // Predicated region
        $region25: #{tpu_custom_call.1} parent=23 // pred_check
          %p161 = pneg %p36
        $region26: #{tpu_custom_call.1} parent=23 // pred_check_branch
          %163 = sbr.rel (%p161) target = $region28
        $region27: #{tpu_custom_call.1} parent=23 // pred_region
          %s164 = sand.u32 %s26, 1
          %s165 = scalar_lea.sflag [#allocation3], %s164
          %s166 = sand.u32 %s26, 1
          %s167 = smul.addr %s166, 64
          %s168 = scalar_lea.vmem [#allocation2], %s167
          %s170 = ssub.s32 1024, 1024
          %171 = vsyncadd %s165, %s170
          %s172 = smul.addr %s16, 8
          %s173 = smul.addr %s172, 128
          %s174 = scalar_lea.hbm %s0, %s173
          %s175 = sshll.u32 %s168, 4
          %s176 = int_to_ptr.vmem [resolvable:$true] %s175
          %181 = dma.hbm_to_vmem [thread:$0]  %s174, 1024, %s176, %s165, 256, 256, 16
        $region28: #{tpu_custom_call.1} parent=23 // pred_fallthru
          _
        // Predicated region
        $region29: #{tpu_custom_call.1} parent=23 // pred_check
          %p182 = pneg %p62
        $region30: #{tpu_custom_call.1} parent=23 // pred_check_branch
          %184 = sbr.rel (%p182) target = $region32
        $region31: #{tpu_custom_call.1} parent=23 // pred_region
          %p185 = scmp.lt.s32.totalorder %s16, 1
          %s186 = scalar_select %p185, %s16, 1
          %s187 = smul.addr %s186, 2
          %s188 = scalar_lea.vmem %s1, %s187
        $region32: #{tpu_custom_call.1} parent=23 // pred_fallthru
          _
      $region24: #{tpu_custom_call.1} parent=5 // pred_fallthru
        _
      %p189 = scmp.le.s32.totalorder 1, %s16
      %p190 = scmp.lt.s32.totalorder %s16, 3
      %p191 = pnand %p189, %p190
      %p192 = pneg %p191
      // Predicated region
      $region33: #{tpu_custom_call.1} parent=5 // pred_check
        _
      $region34: #{tpu_custom_call.1} parent=5 // pred_check_branch
        %194 = sbr.rel (%p191) target = $region36
      $region35: #{tpu_custom_call.1} parent=5 // pred_region
        %s195 = ssub.s32 %s16, 1
        %s196 = sand.u32 %s29, 1
        %s197 = scalar_lea.sflag [#allocation3], %s196
        %s198 = sand.u32 %s29, 1
        %s199 = smul.addr %s198, 64
        %s200 = scalar_lea.vmem [#allocation2], %s199
        // Predicated region
        $region37: #{tpu_custom_call.1} parent=35 // pred_check
          %p201 = pneg %p42
        $region38: #{tpu_custom_call.1} parent=35 // pred_check_branch
          %203 = sbr.rel (%p201) target = $region40
        $region39: #{tpu_custom_call.1} parent=35 // pred_region
          %204 = dma.done %s197, 1024
        $region40: #{tpu_custom_call.1} parent=35 // pred_fallthru
          _
        %s205 = sand.u32 %s29, 1
        %s206 = scalar_lea.sflag [#allocation3], %s205
        %s207 = sand.u32 %s29, 1
        %s208 = smul.addr %s207, 64
        %s209 = scalar_lea.vmem [#allocation2], %s208
        %p210 = pneg %p42
        %p211 = pneg %p39
        %p212 = scmp.lt.s32.totalorder %s21, 1
        %s213 = scalar_select %p212, %s21, 1
        %s214 = smul.addr %s213, 2
        %s215 = scalar_lea.vmem %s1, %s214
        %p216 = pneg %p68
        %p217 = pneg %p65
        %p218 = pneg %p89
        %p219 = pneg %p86
        %p220 = pneg %p110
        %p221 = pneg %p107
        %p222 = pneg %p136
        %p223 = pneg %p133
        %s224 = sand.u32 %s123, 1
        %s225 = scalar_lea.sflag [#allocation4], %s224
        %s226 = sand.u32 %s123, 1
        %s227 = smul.addr %s226, 64
        %s228 = scalar_lea.vmem [#allocation5], %s227
        %p229 = scmp.lt.s32.totalorder %s21, 1
        %s230 = scalar_select %p229, %s21, 1
        %s231 = smul.addr %s230, 2
        %s232 = scalar_lea.vmem %s1, %s231
        %v233 = vld [vmem:[%s200] sm:$0xff]
        %v234 = vld [vmem:[%s200 + $0x8] sm:$0xff]
        %v235 = vld [vmem:[%s200 + $0x10] sm:$0xff]
        %v236 = vld [vmem:[%s200 + $0x18] sm:$0xff]
        %v237 = vld [vmem:[%s200 + $0x20] sm:$0xff]
        %v238 = vld [vmem:[%s200 + $0x28] sm:$0xff]
        %v239 = vld [vmem:[%s200 + $0x30] sm:$0xff]
        %v240 = vld [vmem:[%s200 + $0x38] sm:$0xff]
        %v241 = vlaneseq
        %v242 = vand.u32 %v241, 127
        %v243 = vadd.s32 %v242, 128
        %vm244 = vcmp.lt.s32.totalorder %v242, 256
        %vm245 = vcmp.lt.s32.totalorder %v243, 256
        %v246 = vsel %vm244, %v233, 0.0
        %v247 = vsel %vm245, %v234, 0.0
        %v248 = vsel %vm244, %v235, 0.0
        %v249 = vsel %vm245, %v236, 0.0
        %v250 = vsel %vm244, %v237, 0.0
        %v251 = vsel %vm245, %v238, 0.0
        %v252 = vsel %vm244, %v239, 0.0
        %v253 = vsel %vm245, %v240, 0.0
        %v254 = vadd.f32 %v246, %v247
        %255 = vadd.xlane.f32.xlu0 %v254
        %v256 = vpop.xlane.xlu0 %255
        %v257 = vadd.f32 %v248, %v249
        %258 = vadd.xlane.f32.xlu0 %v257
        %v259 = vpop.xlane.xlu0 %258
        %v260 = vadd.f32 %v250, %v251
        %261 = vadd.xlane.f32.xlu0 %v260
        %v262 = vpop.xlane.xlu0 %261
        %v263 = vadd.f32 %v252, %v253
        %264 = vadd.xlane.f32.xlu0 %v263
        %v265 = vpop.xlane.xlu0 %264
        %v266 = vmul.f32 %v256, 0.00390625
        %v267 = vmul.f32 %v259, 0.00390625
        %v268 = vmul.f32 %v262, 0.00390625
        %v269 = vmul.f32 %v265, 0.00390625
        %v270 = vld [vmem:[%s2] sm:$0xff]
        %v271 = vld [vmem:[%s2 + $0x8] sm:$0xff]
        %v272 = vld [vmem:[%s2 + $0x10] sm:$0xff]
        %v273 = vld [vmem:[%s2 + $0x18] sm:$0xff]
        %v274 = vmul.f32 %v266, %v270
        %v275 = vmul.f32 %v267, %v271
        %v276 = vmul.f32 %v268, %v272
        %v277 = vmul.f32 %v269, %v273
        %vm278 = vcmask 15360
        %v279 = vsel %vm278, %v274, 0.0
        %v280 = vsel %vm278, %v275, 0.0
        %v281 = vadd.f32 %v279, %v280
        %v282 = vsel %vm278, %v276, 0.0
        %v283 = vadd.f32 %v281, %v282
        %v284 = vsel %vm278, %v277, 0.0
        %v285 = vadd.f32 %v283, %v284
        %v286 = vrot.slane %v285, 4
        %v287 = vadd.f32 %v285, %v286
        %v288 = vrot.slane %v287, 2
        %v289 = vadd.f32 %v287, %v288
        %v290 = vrot.slane %v289, 1
        %v291 = vadd.f32 %v289, %v290
        %v292 = vmax.f32 %v291, 0.0
        %v293 = vld [vmem:[%s3] sm:$0xff]
        %v294 = vld [vmem:[%s3 + $0x8] sm:$0xff]
        %v295 = vld [vmem:[%s3 + $0x10] sm:$0xff]
        %v296 = vld [vmem:[%s3 + $0x18] sm:$0xff]
        %v297 = vmul.f32 %v292, %v293
        %v298 = vmul.f32 %v292, %v294
        %v299 = vmul.f32 %v292, %v295
        %v300 = vmul.f32 %v292, %v296
        %v301 = vsel %vm278, %v297, 0.0
        %302 = vadd.xlane.f32.xlu0 %v301
        %v303 = vpop.xlane.xlu0 %302
        %v304 = vsel %vm278, %v298, 0.0
        %305 = vadd.xlane.f32.xlu0 %v304
        %v306 = vpop.xlane.xlu0 %305
        %v307 = vsel %vm278, %v299, 0.0
        %308 = vadd.xlane.f32.xlu0 %v307
        %v309 = vpop.xlane.xlu0 %308
        %v310 = vsel %vm278, %v300, 0.0
        %311 = vadd.xlane.f32.xlu0 %v310
        %v312 = vpop.xlane.xlu0 %311
        %v313 = vxor.u32 %v303, 2147483648
        %v314 = vxor.u32 %v306, 2147483648
        %v315 = vxor.u32 %v309, 2147483648
        %v316 = vxor.u32 %v312, 2147483648
        %v317 = vmul.f32 %v313, 1.442695
        %v318 = vpow.pop %v317
        %v319 = vmul.f32 %v314, 1.442695
        %v320 = vpow.pop %v319
        %v321 = vmul.f32 %v315, 1.442695
        %v322 = vpow.pop %v321
        %v323 = vmul.f32 %v316, 1.442695
        %v324 = vpow.pop %v323
        %v325 = vadd.f32 %v318, 1.0
        %v326 = vadd.f32 %v320, 1.0
        %v327 = vadd.f32 %v322, 1.0
        %v328 = vadd.f32 %v324, 1.0
        %v329 = vrcp.pop %v325
        %v330 = vmul.f32 1.0, %v329
        %v331 = vrcp.pop %v326
        %v332 = vmul.f32 1.0, %v331
        %v333 = vrcp.pop %v327
        %v334 = vmul.f32 1.0, %v333
        %v335 = vrcp.pop %v328
        %v336 = vmul.f32 1.0, %v335
        %v337 = vmul.f32 %v233, %v330
        %v338 = vmul.f32 %v234, %v330
        %v339 = vmul.f32 %v235, %v332
        %v340 = vmul.f32 %v236, %v332
        %v341 = vmul.f32 %v237, %v334
        %v342 = vmul.f32 %v238, %v334
        %v343 = vmul.f32 %v239, %v336
        %v344 = vmul.f32 %v240, %v336
        %v345 = vld [vmem:[%s232] sm:$0x3]
        %v347 = vlaneseq
        %v348 = vshrl.u32 %v347, 7
        %v349 = vsub.s32 0, %v348
        %v350 = vrot.slane %v345, %v349
        %v351 = vlaneseq
        %v352 = vshrl.u32 %v351, 7
        %v353 = vsub.s32 1, %v352
        %v354 = vrot.slane %v345, %v353
        %v357 = vmul.f32 %v337, %v350
        %v358 = vmul.f32 %v338, %v354
        %v359 = vmul.f32 %v339, %v350
        %v360 = vmul.f32 %v340, %v354
        %v361 = vmul.f32 %v341, %v350
        %v362 = vmul.f32 %v342, %v354
        %v363 = vmul.f32 %v343, %v350
        %v364 = vmul.f32 %v344, %v354
        %365 = vst [vmem:[%s228] sm:$0xff] %v357
        %366 = vst [vmem:[%s228 + $0x8] sm:$0xff] %v358
        %367 = vst [vmem:[%s228 + $0x10] sm:$0xff] %v359
        %368 = vst [vmem:[%s228 + $0x18] sm:$0xff] %v360
        %369 = vst [vmem:[%s228 + $0x20] sm:$0xff] %v361
        %370 = vst [vmem:[%s228 + $0x28] sm:$0xff] %v362
        %371 = vst [vmem:[%s228 + $0x30] sm:$0xff] %v363
        %372 = vst [vmem:[%s228 + $0x38] sm:$0xff] %v364
        %s373 = sand.u32 %s123, 1
        %s374 = scalar_lea.sflag [#allocation4], %s373
        %s375 = sand.u32 %s123, 1
        %s376 = smul.addr %s375, 64
        %s377 = scalar_lea.vmem [#allocation5], %s376
        // Predicated region
        $region41: #{tpu_custom_call.1} parent=35 // pred_check
          %p378 = pneg %p133
        $region42: #{tpu_custom_call.1} parent=35 // pred_check_branch
          %380 = sbr.rel (%p378) target = $region44
        $region43: #{tpu_custom_call.1} parent=35 // pred_region
          %s382 = ssub.s32 1024, 1024
          %383 = vsyncadd %s374, %s382
          %s384 = smul.addr %s21, 8
          %s385 = smul.addr %s384, 128
          %s386 = scalar_lea.hbm %s4, %s385
          %s387 = sshll.u32 %s377, 4
          %s388 = int_to_ptr.vmem [resolvable:$true] %s387
          %393 = dma.vmem_to_hbm [thread:$0]  %s388, 1024, %s386, %s374, 256, 256, 16
        $region44: #{tpu_custom_call.1} parent=35 // pred_fallthru
          _
      $region36: #{tpu_custom_call.1} parent=5 // pred_fallthru
        _
      %p394 = scmp.le.s32.totalorder 2, %s16
      // Predicated region
      $region45: #{tpu_custom_call.1} parent=5 // pred_check
        %p395 = pneg %p394
      $region46: #{tpu_custom_call.1} parent=5 // pred_check_branch
        %397 = sbr.rel (%p395) target = $region48
      $region47: #{tpu_custom_call.1} parent=5 // pred_region
        %s398 = ssub.s32 %s16, 2
        // Predicated region
        $region49: #{tpu_custom_call.1} parent=47 // pred_check
          %p399 = pneg %p139
        $region50: #{tpu_custom_call.1} parent=47 // pred_check_branch
          %401 = sbr.rel (%p399) target = $region52
        $region51: #{tpu_custom_call.1} parent=47 // pred_region
          %s402 = sand.u32 %s124, 1
          %s403 = scalar_lea.sflag [#allocation4], %s402
          %s404 = sand.u32 %s124, 1
          %s405 = smul.addr %s404, 64
          %s406 = scalar_lea.vmem [#allocation5], %s405
          %407 = dma.done %s403, 1024
        $region52: #{tpu_custom_call.1} parent=47 // pred_fallthru
          _
      $region48: #{tpu_custom_call.1} parent=5 // pred_fallthru
        _
    $region6: #{tpu_custom_call.1} parent=1 // loop_footer
      %s20 = sadd.s32 1, %s16
    $region7: #{tpu_custom_call.1} parent=1 // loop_footer_branch
      %15 = sbr.rel target = $region3
    $region8: #{tpu_custom_call.1} parent=1 // loop_exit
      _
    %408 = vsyncpa [#allocation3], 1
    %s409 = scalar_lea.sflag [#allocation3], 1
    %410 = vsyncpa %s409, 1
    %411 = vsyncpa [#allocation4], 1
    %s412 = scalar_lea.sflag [#allocation4], 1
    %413 = vsyncpa %s412, 1

</llo_original>
